<compile_context>
chip_gen: v7x
topology: tpu7x:2x2x1
jax: 0.10.0
libtpu: 0.0.40
codegen_flags: <defaults>
</compile_context>

<pallas_src>
import jax
import jax.numpy as jnp
from jax.experimental import pallas as pl
from jax.experimental.pallas import tpu as pltpu


def _passthrough_kernel(x_ref, o_ref):
    # One scalar load + one scalar store on the SMEM path.  With the output
    # aliased onto the input this is effectively a no-op passthrough.
    o_ref[0, 0] = x_ref[0, 0]


@jax.jit
def view_expand_ones(a):
    """Equivalent of `a.view(1, 1, 1, 1, 1)` for a float32 tensor of shape (1,)."""
    assert a.shape == (1,), f"expected shape (1,), got {a.shape}"

    # Metadata-only: present a 2-D (1, 1) scalar to the kernel.
    a2d = a.reshape(1, 1)

    copied = pl.pallas_call(
        _passthrough_kernel,
        out_shape=jax.ShapeDtypeStruct((1, 1), a.dtype),
        in_specs=[pl.BlockSpec(memory_space=pltpu.MemorySpace.SMEM)],
        out_specs=pl.BlockSpec(memory_space=pltpu.MemorySpace.SMEM),
        # P8: alias output onto the input buffer -> no extra HBM allocation,
        # no writeback of a new buffer; the op is a passthrough.
        input_output_aliases={0: 0},
    )(a2d)

    # view() on a contiguous buffer is a metadata-only rank change.
    return copied.reshape(1, 1, 1, 1, 1)


if __name__ == "__main__":
    key = jax.random.PRNGKey(0)
    a = jax.random.normal(key, (1,), dtype=jnp.float32)

    # Pure-JAX reference semantics (computed up front).
    expected = a.reshape(1, 1, 1, 1, 1)

    out = view_expand_ones(a)
    jax.block_until_ready(out)

    assert out.shape == (1, 1, 1, 1, 1), out.shape
    assert out.dtype == jnp.float32
    assert jnp.array_equal(out, expected)

    print("KERNEL_OK")
</pallas_src>

<mosaic_0001>
module attributes {stable_mosaic.version = 11 : i64} {
  func.func @_passthrough_kernel(%arg0: memref<1x1xf32, #tpu.memory_space<smem>>, %arg1: memref<1x1xf32, #tpu.memory_space<smem>>) attributes {dimension_semantics = [], scalar_prefetch = 0 : i64, scratch_operands = 0 : i64, tpu.core_type = #tpu.core_type<tc>} {
    %c0 = arith.constant 0 : index
    %c0_0 = arith.constant 0 : index
    %0 = memref.load %arg0[%c0, %c0_0] : memref<1x1xf32, #tpu.memory_space<smem>>
    %c0_1 = arith.constant 0 : index
    %c0_2 = arith.constant 0 : index
    %1 = memref.load %arg1[%c0_1, %c0_2] : memref<1x1xf32, #tpu.memory_space<smem>>
    memref.store %0, %arg1[%c0_1, %c0_2] : memref<1x1xf32, #tpu.memory_space<smem>>
    return
  }
}

</mosaic_0001>

<llo_original>
// kernel: view_expand_ones.1
$region0: #{view_expand_ones.1}
  #allocation0 [shape = 'u32[]', space=smem, size = 0x4, offset = 0x4, fixed_abs, tag = 'smem constant byte address 0x4 - core index']
  #allocation1 [shape = 'u32[144,128]{1,0:T(1,128)}', space=vmem, size = 0x12000, scoped, tag = 'internal scratch']
  #allocation2 [shape = 'f32[1,1]{1,0:T(1,128)S(6)}', space=smem, size = 0x200, scoped, tag = 'scoped memory for view_expand_ones.1']
  %s0 = inlined_call_operand.<no memory space> [shape: f32[1,1], index: 0, kind: input, shape index: {}, may-alias: {0,1}]
  %s1 = inlined_call_operand.hbm [shape: f32[1,1], index: 1, kind: output, shape index: {}, may-alias: {0,1}]
  %s2 = sld [smem:[#allocation0]]
  $region14: #{view_expand_ones.1} parent=0
    _
  %s4 = ssub.s32 1, %s2
  %s5 = scalar_select 0, %s4, %s2
  %6 = sst [smem:[#allocation2]] %s0
  $region1: #{view_expand_ones.1} parent=0
    #allocation3 [shape = 'u8[512]{0}', space=smem, size = 0x200, scoped, tag = 'output window, operand 0, single buffered']
    #allocation4 [shape = 's32[1]{0}', space=sflag, size = 0x4, scoped, tag = 'scoped memory for view_expand_ones.1']
    %7 = vsyncpa [#allocation4], 0
    // Predicated region
    $region2: #{view_expand_ones.1} parent=1 // pred_check
      _
    $region3: #{view_expand_ones.1} parent=1 // pred_check_branch
      %9 = sbr.rel (0) target = $region5
    $region4: #{view_expand_ones.1} parent=1 // pred_region
      _
    $region5: #{view_expand_ones.1} parent=1 // pred_fallthru
      _
    %s10 = sld [smem:[#allocation2]]
    %s11 = scalar_lea.smem [#allocation3], 0
    %12 = sst [smem:[%s11]] %s10
    // Predicated region
    $region6: #{view_expand_ones.1} parent=1 // pred_check
      _
    $region7: #{view_expand_ones.1} parent=1 // pred_check_branch
      %14 = sbr.rel (0) target = $region9
    $region8: #{view_expand_ones.1} parent=1 // pred_region
      %s16 = ssub.s32 16, 16
      %17 = vsyncadd [#allocation4], %s16
      %20 = dma.smem_to_hbm [#allocation3], 16, %s1, [#allocation4]
    $region9: #{view_expand_ones.1} parent=1 // pred_fallthru
      _
    // Predicated region
    $region10: #{view_expand_ones.1} parent=1 // pred_check
      _
    $region11: #{view_expand_ones.1} parent=1 // pred_check_branch
      %22 = sbr.rel (0) target = $region13
    $region12: #{view_expand_ones.1} parent=1 // pred_region
      %23 = dma.done [#allocation4], 16
    $region13: #{view_expand_ones.1} parent=1 // pred_fallthru
      _
    %24 = sfence
    %25 = vsyncpa [#allocation4], 1

</llo_original>
